<compile_context>
chip_gen: v5e
topology: v5e:2x2
jax: 0.10.0
libtpu: 0.0.40
codegen_flags: <defaults>
</compile_context>

<pallas_src>
from functools import partial

import numpy as np
import jax
import jax.numpy as jnp
from jax import lax
from jax.experimental import pallas as pl
from jax.experimental.pallas import tpu as pltpu


# Contract the last axis of both operands: (m, k) x (n, k) -> (m, n),
# i.e. A @ B.T without materializing a transpose.
_DN_T = (((1,), (1,)), ((), ()))


def _simple_attn_kernel(x_ref, kqw_ref, vw_ref, ow_ref, o_ref, *,
                        scale, kq_gain, v_gain, out_gain, alpha, eps):
    # Block shapes (batch dim squeezed away by the BlockSpec):
    #   x_ref : (N, D)   kqw_ref, vw_ref : (H, D)   ow_ref : (D, H)   o_ref : (N, D)
    x = x_ref[...].astype(jnp.float32)
    kq_w = kqw_ref[...].astype(jnp.float32) * kq_gain     # w = weight * weight_gain
    v_w = vw_ref[...].astype(jnp.float32) * v_gain
    out_w = ow_ref[...].astype(jnp.float32) * out_gain

    # c = kq(x) = x @ (gain * W_kq).T                                   (N, H)
    c = lax.dot_general(x, kq_w, _DN_T, preferred_element_type=jnp.float32)

    # normalize(c) with dim=None: one Frobenius norm per batch element (f32).
    ss = jnp.sum(jnp.sum(c * c, axis=1, keepdims=True), axis=0, keepdims=True)  # (1, 1)
    denom = eps + alpha * jnp.sqrt(ss)
    c = c * pl.reciprocal(denom, approx=False)

    # S = softmax(scale * c @ c.T, axis=-1)                              (N, N)
    s = lax.dot_general(c, c, _DN_T, preferred_element_type=jnp.float32) * scale
    s_max = jnp.max(s, axis=-1, keepdims=True)
    p = jnp.exp(s - s_max)
    p = p * pl.reciprocal(jnp.sum(p, axis=-1, keepdims=True), approx=False)

    # v = v(x); o = S @ v; out = out(o)
    v = lax.dot_general(x, v_w, _DN_T, preferred_element_type=jnp.float32)        # (N, H)
    o = jnp.dot(p, v, preferred_element_type=jnp.float32)                         # (N, H)
    out = lax.dot_general(o, out_w, _DN_T, preferred_element_type=jnp.float32)    # (N, D)

    o_ref[...] = out.astype(o_ref.dtype)


def simple_attn_forward(x, kq_w, v_w, out_w, *, kq_gain, v_gain, out_gain,
                        scale, eps=1e-4):
    """Fused Pallas forward pass of SimpleAttn.  x: (B, N, dim)."""
    B, N, D = x.shape
    H = kq_w.shape[0]
    # normalize() scaling: sqrt(norm.numel() / c.numel()) = sqrt(B / (B*N*H)).
    alpha = float(np.sqrt(1.0 / (N * H)))

    kernel = partial(
        _simple_attn_kernel,
        scale=float(scale), kq_gain=float(kq_gain), v_gain=float(v_gain),
        out_gain=float(out_gain), alpha=alpha, eps=float(eps),
    )

    return pl.pallas_call(
        kernel,
        out_shape=jax.ShapeDtypeStruct((B, N, D), x.dtype),
        grid=(B,),
        in_specs=[
            pl.BlockSpec((None, N, D), lambda b: (b, 0, 0)),   # x: one batch elem / step
            pl.BlockSpec((H, D), lambda b: (0, 0)),            # W_kq (resident, constant idx)
            pl.BlockSpec((H, D), lambda b: (0, 0)),            # W_v
            pl.BlockSpec((D, H), lambda b: (0, 0)),            # W_out
        ],
        out_specs=pl.BlockSpec((None, N, D), lambda b: (b, 0, 0)),
        compiler_params=pltpu.CompilerParams(dimension_semantics=("parallel",)),
    )(x, kq_w, v_w, out_w)


class SimpleAttn:
    """JAX/Pallas counterpart of the PyTorch SimpleAttn module."""

    def __init__(self, dim, hidden_dim=64, *, key=None, dtype=jnp.float32, eps=1e-4):
        if key is None:
            key = jax.random.PRNGKey(0)
        k1, k2, k3 = jax.random.split(key, 3)
        # FullyConnected init: uniform(-1/lr_mult, 1/lr_mult) with lr_mult = 1.
        self.kq_w = jax.random.uniform(k1, (hidden_dim, dim), dtype, -1.0, 1.0)
        self.v_w = jax.random.uniform(k2, (hidden_dim, dim), dtype, -1.0, 1.0)
        self.out_w = jax.random.uniform(k3, (dim, hidden_dim), dtype, -1.0, 1.0)
        # weight_gain = lr_mult / sqrt(in_features)
        self.kq_gain = 1.0 / float(np.sqrt(dim))
        self.v_gain = 1.0 / float(np.sqrt(dim))
        self.out_gain = 1.0 / float(np.sqrt(hidden_dim))
        self.scale = float(hidden_dim) ** -0.5
        self.eps = eps

    def __call__(self, x):
        return simple_attn_forward(
            x, self.kq_w, self.v_w, self.out_w,
            kq_gain=self.kq_gain, v_gain=self.v_gain, out_gain=self.out_gain,
            scale=self.scale, eps=self.eps,
        )


def _reference_simple_attn(x, kq_w, v_w, out_w, *, kq_gain, v_gain, out_gain,
                           scale, eps):
    """Pure-numpy (float64) reference mirroring the PyTorch forward."""
    x64 = np.asarray(x, dtype=np.float64)
    kq = np.asarray(kq_w, dtype=np.float64) * kq_gain
    vw = np.asarray(v_w, dtype=np.float64) * v_gain
    ow = np.asarray(out_w, dtype=np.float64) * out_gain

    c = np.einsum("bnd,hd->bnh", x64, kq)
    _, N, H = c.shape
    nrm = np.sqrt((c ** 2).sum(axis=(1, 2), keepdims=True))
    c = c / (eps + np.sqrt(1.0 / (N * H)) * nrm)

    s = np.einsum("bnh,bmh->bnm", c, c) * scale
    s = s - s.max(axis=-1, keepdims=True)
    p = np.exp(s)
    p = p / p.sum(axis=-1, keepdims=True)

    v = np.einsum("bnd,hd->bnh", x64, vw)
    o = np.einsum("bnm,bmh->bnh", p, v)
    return np.einsum("bnh,dh->bnd", o, ow)


if __name__ == "__main__":
    key = jax.random.PRNGKey(0)
    kx, kw = jax.random.split(key)

    B, N, DIM, HID = 2, 8, 32, 64
    x = jax.random.normal(kx, (B, N, DIM), dtype=jnp.float32)

    attn = SimpleAttn(DIM, HID, key=kw)
    out = attn(x)
    out = jax.block_until_ready(out)

    ref = _reference_simple_attn(
        x, attn.kq_w, attn.v_w, attn.out_w,
        kq_gain=attn.kq_gain, v_gain=attn.v_gain, out_gain=attn.out_gain,
        scale=attn.scale, eps=attn.eps,
    )
    # Tolerance accommodates the MXU's reduced-precision f32 matmul passes
    # across the 4 chained matmuls + softmax; any semantic error (wrong axis,
    # missing gain/normalize/scale) is orders of magnitude larger.
    np.testing.assert_allclose(np.asarray(out, dtype=np.float64), ref,
                               rtol=2e-2, atol=2e-2)

    print("KERNEL_OK")
</pallas_src>

<mosaic_0001>
module attributes {stable_mosaic.version = 11 : i64} {
  func.func @_simple_attn_kernel(%arg0: i32, %arg1: memref<1x8x32xf32, #tpu.memory_space<vmem>>, %arg2: memref<64x32xf32, #tpu.memory_space<vmem>>, %arg3: memref<64x32xf32, #tpu.memory_space<vmem>>, %arg4: memref<32x64xf32, #tpu.memory_space<vmem>>, %arg5: memref<1x8x32xf32, #tpu.memory_space<vmem>>) attributes {dimension_semantics = [#tpu.dimension_semantics<parallel>], iteration_bounds = array<i64: 2>, scalar_prefetch = 0 : i64, scratch_operands = 0 : i64, tpu.core_type = #tpu.core_type<tc>, window_params = [{transform_indices = @transform_0, window_bounds = array<i64: 1, 8, 32>}, {pipeline_mode = #tpu.pipeline_mode<synchronous>, transform_indices = @transform_1, window_bounds = array<i64: 64, 32>}, {pipeline_mode = #tpu.pipeline_mode<synchronous>, transform_indices = @transform_2, window_bounds = array<i64: 64, 32>}, {pipeline_mode = #tpu.pipeline_mode<synchronous>, transform_indices = @transform_3, window_bounds = array<i64: 32, 64>}, {transform_indices = @transform_4, window_bounds = array<i64: 1, 8, 32>}]} {
    %c0 = arith.constant 0 : index
    %c0_0 = arith.constant 0 : index
    %c0_1 = arith.constant 0 : index
    %0 = vector.load %arg1[%c0, %c0_0, %c0_1] : memref<1x8x32xf32, #tpu.memory_space<vmem>>, vector<1x8x32xf32>
    %1 = vector.shape_cast %0 : vector<1x8x32xf32> to vector<8x32xf32>
    %c0_2 = arith.constant 0 : index
    %c0_3 = arith.constant 0 : index
    %2 = vector.load %arg2[%c0_2, %c0_3] : memref<64x32xf32, #tpu.memory_space<vmem>>, vector<64x32xf32>
    %cst = arith.constant 0.176776692 : f32
    %3 = vector.broadcast %cst : f32 to vector<64x32xf32>
    %4 = arith.mulf %2, %3 : vector<64x32xf32>
    %c0_4 = arith.constant 0 : index
    %c0_5 = arith.constant 0 : index
    %5 = vector.load %arg3[%c0_4, %c0_5] : memref<64x32xf32, #tpu.memory_space<vmem>>, vector<64x32xf32>
    %cst_6 = arith.constant 0.176776692 : f32
    %6 = vector.broadcast %cst_6 : f32 to vector<64x32xf32>
    %7 = arith.mulf %5, %6 : vector<64x32xf32>
    %c0_7 = arith.constant 0 : index
    %c0_8 = arith.constant 0 : index
    %8 = vector.load %arg4[%c0_7, %c0_8] : memref<32x64xf32, #tpu.memory_space<vmem>>, vector<32x64xf32>
    %cst_9 = arith.constant 1.250000e-01 : f32
    %9 = vector.broadcast %cst_9 : f32 to vector<32x64xf32>
    %10 = arith.mulf %8, %9 : vector<32x64xf32>
    %cst_10 = arith.constant dense<0.000000e+00> : vector<8x64xf32>
    %11 = tpu.matmul %1, %4, %cst_10 {dimension_numbers = #tpu.dot_dimension_numbers<[1], [1], [0], [0], [0, 0, 1, 0], [], []>} : vector<8x32xf32>, vector<64x32xf32>, vector<8x64xf32> -> vector<8x64xf32>
    %12 = arith.mulf %11, %11 : vector<8x64xf32>
    %cst_11 = arith.constant dense<0.000000e+00> : vector<8xf32>
    %13 = vector.multi_reduction <add>, %12, %cst_11 [1] : vector<8x64xf32> to vector<8xf32>
    %14 = vector.shape_cast %13 : vector<8xf32> to vector<8x1xf32>
    %cst_12 = arith.constant dense<0.000000e+00> : vector<1xf32>
    %15 = vector.multi_reduction <add>, %14, %cst_12 [0] : vector<8x1xf32> to vector<1xf32>
    %16 = vector.shape_cast %15 : vector<1xf32> to vector<1x1xf32>
    %17 = math.sqrt %16 : vector<1x1xf32>
    %cst_13 = arith.constant 0.0441941731 : f32
    %18 = vector.broadcast %cst_13 : f32 to vector<1x1xf32>
    %19 = arith.mulf %18, %17 : vector<1x1xf32>
    %cst_14 = arith.constant 9.99999974E-5 : f32
    %20 = vector.broadcast %cst_14 : f32 to vector<1x1xf32>
    %21 = arith.addf %20, %19 : vector<1x1xf32>
    %22 = tpu.reciprocal %21 : vector<1x1xf32> -> vector<1x1xf32>
    %23 = vector.broadcast %22 : vector<1x1xf32> to vector<8x64xf32>
    %24 = arith.mulf %11, %23 : vector<8x64xf32>
    %cst_15 = arith.constant dense<0.000000e+00> : vector<8x8xf32>
    %25 = tpu.matmul %24, %24, %cst_15 {dimension_numbers = #tpu.dot_dimension_numbers<[1], [1], [0], [0], [0, 0, 1, 0], [], []>} : vector<8x64xf32>, vector<8x64xf32>, vector<8x8xf32> -> vector<8x8xf32>
    %cst_16 = arith.constant 1.250000e-01 : f32
    %26 = vector.broadcast %cst_16 : f32 to vector<8x8xf32>
    %27 = arith.mulf %25, %26 : vector<8x8xf32>
    %cst_17 = arith.constant dense<0xFF800000> : vector<8xf32>
    %28 = vector.multi_reduction <maximumf>, %27, %cst_17 [1] : vector<8x8xf32> to vector<8xf32>
    %29 = vector.shape_cast %28 : vector<8xf32> to vector<8x1xf32>
    %30 = vector.broadcast %29 : vector<8x1xf32> to vector<8x8xf32>
    %31 = arith.subf %27, %30 : vector<8x8xf32>
    %32 = math.exp %31 : vector<8x8xf32>
    %cst_18 = arith.constant dense<0.000000e+00> : vector<8xf32>
    %33 = vector.multi_reduction <add>, %32, %cst_18 [1] : vector<8x8xf32> to vector<8xf32>
    %34 = vector.shape_cast %33 : vector<8xf32> to vector<8x1xf32>
    %35 = tpu.reciprocal %34 : vector<8x1xf32> -> vector<8x1xf32>
    %36 = vector.broadcast %35 : vector<8x1xf32> to vector<8x8xf32>
    %37 = arith.mulf %32, %36 : vector<8x8xf32>
    %cst_19 = arith.constant dense<0.000000e+00> : vector<8x64xf32>
    %38 = tpu.matmul %1, %7, %cst_19 {dimension_numbers = #tpu.dot_dimension_numbers<[1], [1], [0], [0], [0, 0, 1, 0], [], []>} : vector<8x32xf32>, vector<64x32xf32>, vector<8x64xf32> -> vector<8x64xf32>
    %cst_20 = arith.constant dense<0.000000e+00> : vector<8x64xf32>
    %39 = tpu.matmul %37, %38, %cst_20 {dimension_numbers = #tpu.dot_dimension_numbers<[1], [0], [0], [1], [0, 0, 1, 1], [], []>} : vector<8x8xf32>, vector<8x64xf32>, vector<8x64xf32> -> vector<8x64xf32>
    %cst_21 = arith.constant dense<0.000000e+00> : vector<8x32xf32>
    %40 = tpu.matmul %39, %10, %cst_21 {dimension_numbers = #tpu.dot_dimension_numbers<[1], [1], [0], [0], [0, 0, 1, 0], [], []>} : vector<8x64xf32>, vector<32x64xf32>, vector<8x32xf32> -> vector<8x32xf32>
    %c0_22 = arith.constant 0 : index
    %c0_23 = arith.constant 0 : index
    %c0_24 = arith.constant 0 : index
    %41 = vector.load %arg5[%c0_22, %c0_23, %c0_24] : memref<1x8x32xf32, #tpu.memory_space<vmem>>, vector<1x8x32xf32>
    %42 = vector.shape_cast %41 : vector<1x8x32xf32> to vector<8x32xf32>
    %43 = vector.shape_cast %40 : vector<8x32xf32> to vector<1x8x32xf32>
    tpu.vector_store %arg5[%c0_22, %c0_23, %c0_24], %43 {strides = array<i32>} : memref<1x8x32xf32, #tpu.memory_space<vmem>>, vector<1x8x32xf32>,
    return
  }
  func.func @transform_0(%arg0: i32) -> (i32, i32, i32) {
    %c0_i32 = arith.constant 0 : i32
    %c0_i32_0 = arith.constant 0 : i32
    %c0_i32_1 = arith.constant 0 : i32
    return %arg0, %c0_i32, %c0_i32_0 : i32, i32, i32
  }
  func.func @transform_1(%arg0: i32) -> (i32, i32) {
    %c0_i32 = arith.constant 0 : i32
    %c0_i32_0 = arith.constant 0 : i32
    %c0_i32_1 = arith.constant 0 : i32
    return %c0_i32, %c0_i32_0 : i32, i32
  }
  func.func @transform_2(%arg0: i32) -> (i32, i32) {
    %c0_i32 = arith.constant 0 : i32
    %c0_i32_0 = arith.constant 0 : i32
    %c0_i32_1 = arith.constant 0 : i32
    return %c0_i32, %c0_i32_0 : i32, i32
  }
  func.func @transform_3(%arg0: i32) -> (i32, i32) {
    %c0_i32 = arith.constant 0 : i32
    %c0_i32_0 = arith.constant 0 : i32
    %c0_i32_1 = arith.constant 0 : i32
    return %c0_i32, %c0_i32_0 : i32, i32
  }
  func.func @transform_4(%arg0: i32) -> (i32, i32, i32) {
    %c0_i32 = arith.constant 0 : i32
    %c0_i32_0 = arith.constant 0 : i32
    %c0_i32_1 = arith.constant 0 : i32
    return %arg0, %c0_i32, %c0_i32_0 : i32, i32, i32
  }
}

</mosaic_0001>

<llo_original>
// kernel: tpu_custom_call.1
$region0: #{tpu_custom_call.1}
  #allocation0 [shape = 'u32[]', space=smem, size = 0x4, offset = 0x4, fixed_abs, tag = 'smem constant byte address 0x4 - core index']
  #allocation1 [shape = 'u32[72,128]{1,0:T(1,128)}', space=vmem, size = 0x9000, scoped, tag = 'internal scratch']
  %s0 = inlined_call_operand.vmem [shape: f32[2,8,32], index: 0, kind: input, shape index: {}]
  %s1 = inlined_call_operand.vmem [shape: f32[64,32], index: 1, kind: input, shape index: {}]
  %s2 = inlined_call_operand.vmem [shape: f32[64,32], index: 2, kind: input, shape index: {}]
  %s3 = inlined_call_operand.vmem [shape: f32[32,64], index: 3, kind: input, shape index: {}]
  %s4 = inlined_call_operand.hbm [shape: f32[2,8,32], index: 4, kind: output, shape index: {}]
  %s5 = sld [smem:[#allocation0]]
  $region49: #{tpu_custom_call.1} parent=0
    _
  %s7 = ssub.s32 1, %s5
  %s8 = scalar_select 0, %s7, %s5
  $region1: #{tpu_custom_call.1} parent=0
    #allocation2 [shape = 'u8[8192]{0}', space=vmem, size = 0x2000, scoped, tag = 'output window, operand 0']
    #allocation3 [shape = 's32[2]{0}', space=sflag, size = 0x8, scoped, tag = 'scoped memory for tpu_custom_call.1']
    %9 = vsyncpa [#allocation3], 0
    %s10 = scalar_lea.sflag [#allocation3], 1
    %11 = vsyncpa %s10, 0
    loop: start=0, step=1, limit=4
    $region2: #{tpu_custom_call.1} parent=1 // loop_pre_header
      _
    $region3: #{tpu_custom_call.1} parent=1 // loop_header
      %s13 = sphi 0, %s17
      %p14 = scmp.ge.s32.totalorder %s13, 4
      %s23 = sphi 0, %s25
      %s26 = sphi 0, %s23
      %s27 = sphi 0, %s26
      %s43 = sphi 0, %s27
      %s47 = sphi 0, %s47
      %s49 = sphi 0, %s47
      %s50 = sphi 0, %s49
      %s64 = sphi 0, %s50
      %s68 = sphi 0, %s68
      %s70 = sphi 0, %s68
      %s71 = sphi 0, %s70
      %s85 = sphi 0, %s71
      %s89 = sphi 0, %s89
      %s91 = sphi 0, %s89
      %s92 = sphi 0, %s91
      %s106 = sphi 0, %s92
      %s112 = sphi 0, %s114
      %s115 = sphi 0, %s112
      %s116 = sphi 0, %s115
      %s132 = sphi 0, %s116
    $region4: #{tpu_custom_call.1} parent=1 // loop_header_branch
      %16 = sbr.rel (%p14) target = $region8
    $region5: #{tpu_custom_call.1} parent=1 // loop_body
      %s18 = ssub.s32 %s13, 1
      %s19 = ssub.s32 %s13, 2
      %s20 = sadd.s32 %s13, 1
      %s21 = ssub.s32 %s13, %s20
      %p22 = scmp.eq.s32.totalorder %s21, 0
      %s24 = sadd.s32 %s23, 1
      %s25 = scalar_select %p22, %s23, %s24
      %p28 = pneg %p22
      %p29 = scmp.eq.s32.totalorder %s13, 1
      %p30 = por %p28, %p29
      %p31 = scmp.ne.s32.totalorder %s23, %s26
      %p32 = scmp.eq.s32.totalorder %s13, 0
      %p33 = por %p31, %p32
      %p34 = scmp.ne.s32.totalorder %s23, %s26
      %p35 = scmp.eq.s32.totalorder %s18, 1
      %p36 = por %p34, %p35
      %p37 = scmp.ne.s32.totalorder %s26, %s27
      %p38 = scmp.eq.s32.totalorder %s18, 0
      %p39 = por %p37, %p38
      %p40 = scmp.ne.s32.totalorder %s26, %s27
      %p41 = scmp.eq.s32.totalorder %s19, 1
      %p42 = por %p40, %p41
      %p44 = scmp.ne.s32.totalorder %s27, %s43
      %p45 = scmp.eq.s32.totalorder %s19, 0
      %p46 = por %p44, %p45
      %s48 = sadd.s32 %s47, 1
      %p51 = scmp.eq.s32.totalorder %s13, 1
      %p52 = scmp.ne.s32.totalorder %s47, %s49
      %p53 = scmp.eq.s32.totalorder %s13, 0
      %p54 = por %p52, %p53
      %p55 = scmp.ne.s32.totalorder %s47, %s49
      %p56 = scmp.eq.s32.totalorder %s18, 1
      %p57 = por %p55, %p56
      %p58 = scmp.ne.s32.totalorder %s49, %s50
      %p59 = scmp.eq.s32.totalorder %s18, 0
      %p60 = por %p58, %p59
      %p61 = scmp.ne.s32.totalorder %s49, %s50
      %p62 = scmp.eq.s32.totalorder %s19, 1
      %p63 = por %p61, %p62
      %p65 = scmp.ne.s32.totalorder %s50, %s64
      %p66 = scmp.eq.s32.totalorder %s19, 0
      %p67 = por %p65, %p66
      %s69 = sadd.s32 %s68, 1
      %p72 = scmp.eq.s32.totalorder %s13, 1
      %p73 = scmp.ne.s32.totalorder %s68, %s70
      %p74 = scmp.eq.s32.totalorder %s13, 0
      %p75 = por %p73, %p74
      %p76 = scmp.ne.s32.totalorder %s68, %s70
      %p77 = scmp.eq.s32.totalorder %s18, 1
      %p78 = por %p76, %p77
      %p79 = scmp.ne.s32.totalorder %s70, %s71
      %p80 = scmp.eq.s32.totalorder %s18, 0
      %p81 = por %p79, %p80
      %p82 = scmp.ne.s32.totalorder %s70, %s71
      %p83 = scmp.eq.s32.totalorder %s19, 1
      %p84 = por %p82, %p83
      %p86 = scmp.ne.s32.totalorder %s71, %s85
      %p87 = scmp.eq.s32.totalorder %s19, 0
      %p88 = por %p86, %p87
      %s90 = sadd.s32 %s89, 1
      %p93 = scmp.eq.s32.totalorder %s13, 1
      %p94 = scmp.ne.s32.totalorder %s89, %s91
      %p95 = scmp.eq.s32.totalorder %s13, 0
      %p96 = por %p94, %p95
      %p97 = scmp.ne.s32.totalorder %s89, %s91
      %p98 = scmp.eq.s32.totalorder %s18, 1
      %p99 = por %p97, %p98
      %p100 = scmp.ne.s32.totalorder %s91, %s92
      %p101 = scmp.eq.s32.totalorder %s18, 0
      %p102 = por %p100, %p101
      %p103 = scmp.ne.s32.totalorder %s91, %s92
      %p104 = scmp.eq.s32.totalorder %s19, 1
      %p105 = por %p103, %p104
      %p107 = scmp.ne.s32.totalorder %s92, %s106
      %p108 = scmp.eq.s32.totalorder %s19, 0
      %p109 = por %p107, %p108
      %s110 = ssub.s32 %s13, %s20
      %p111 = scmp.eq.s32.totalorder %s110, 0
      %s113 = sadd.s32 %s112, 1
      %s114 = scalar_select %p111, %s112, %s113
      %p117 = pneg %p111
      %p118 = scmp.eq.s32.totalorder %s13, 1
      %p119 = por %p117, %p118
      %p120 = scmp.ne.s32.totalorder %s112, %s115
      %p121 = scmp.eq.s32.totalorder %s13, 0
      %p122 = por %p120, %p121
      %p123 = scmp.ne.s32.totalorder %s112, %s115
      %p124 = scmp.eq.s32.totalorder %s18, 1
      %p125 = por %p123, %p124
      %p126 = scmp.ne.s32.totalorder %s115, %s116
      %p127 = scmp.eq.s32.totalorder %s18, 0
      %p128 = por %p126, %p127
      %p129 = scmp.ne.s32.totalorder %s115, %s116
      %p130 = scmp.eq.s32.totalorder %s19, 1
      %p131 = por %p129, %p130
      %p133 = scmp.ne.s32.totalorder %s116, %s132
      %p134 = scmp.eq.s32.totalorder %s19, 0
      %p135 = por %p133, %p134
      %p136 = scmp.le.s32.totalorder 1, %s13
      %p137 = scmp.lt.s32.totalorder %s13, 3
      %p138 = pnand %p136, %p137
      %p139 = pneg %p138
      // Predicated region
      $region9: #{tpu_custom_call.1} parent=5 // pred_check
        _
      $region10: #{tpu_custom_call.1} parent=5 // pred_check_branch
        %141 = sbr.rel (%p138) target = $region12
      $region11: #{tpu_custom_call.1} parent=5 // pred_region
        %s142 = ssub.s32 %s13, 1
        // Predicated region
        $region13: #{tpu_custom_call.1} parent=11 // pred_check
          %p143 = pneg %p60
        $region14: #{tpu_custom_call.1} parent=11 // pred_check_branch
          %145 = sbr.rel (%p143) target = $region16
        $region15: #{tpu_custom_call.1} parent=11 // pred_region
          _
        $region16: #{tpu_custom_call.1} parent=11 // pred_fallthru
          _
        // Predicated region
        $region17: #{tpu_custom_call.1} parent=11 // pred_check
          %p146 = pneg %p81
        $region18: #{tpu_custom_call.1} parent=11 // pred_check_branch
          %148 = sbr.rel (%p146) target = $region20
        $region19: #{tpu_custom_call.1} parent=11 // pred_region
          _
        $region20: #{tpu_custom_call.1} parent=11 // pred_fallthru
          _
        // Predicated region
        $region21: #{tpu_custom_call.1} parent=11 // pred_check
          %p149 = pneg %p102
        $region22: #{tpu_custom_call.1} parent=11 // pred_check_branch
          %151 = sbr.rel (%p149) target = $region24
        $region23: #{tpu_custom_call.1} parent=11 // pred_region
          _
        $region24: #{tpu_custom_call.1} parent=11 // pred_fallthru
          _
      $region12: #{tpu_custom_call.1} parent=5 // pred_fallthru
        _
      %p152 = scmp.lt.s32.totalorder %s13, 2
      // Predicated region
      $region25: #{tpu_custom_call.1} parent=5 // pred_check
        %p153 = pneg %p152
      $region26: #{tpu_custom_call.1} parent=5 // pred_check_branch
        %155 = sbr.rel (%p153) target = $region28
      $region27: #{tpu_custom_call.1} parent=5 // pred_region
        // Predicated region
        $region29: #{tpu_custom_call.1} parent=27 // pred_check
          %p156 = pneg %p33
        $region30: #{tpu_custom_call.1} parent=27 // pred_check_branch
          %158 = sbr.rel (%p156) target = $region32
        $region31: #{tpu_custom_call.1} parent=27 // pred_region
          %p159 = scmp.lt.s32.totalorder %s13, 1
          %s160 = scalar_select %p159, %s13, 1
          %s161 = smul.addr %s160, 8
          %s162 = scalar_lea.vmem %s0, %s161
        $region32: #{tpu_custom_call.1} parent=27 // pred_fallthru
          _
      $region28: #{tpu_custom_call.1} parent=5 // pred_fallthru
        _
      %p163 = scmp.le.s32.totalorder 1, %s13
      %p164 = scmp.lt.s32.totalorder %s13, 3
      %p165 = pnand %p163, %p164
      %p166 = pneg %p165
      // Predicated region
      $region33: #{tpu_custom_call.1} parent=5 // pred_check
        _
      $region34: #{tpu_custom_call.1} parent=5 // pred_check_branch
        %168 = sbr.rel (%p165) target = $region36
      $region35: #{tpu_custom_call.1} parent=5 // pred_region
        %s169 = ssub.s32 %s13, 1
        %p170 = scmp.lt.s32.totalorder %s18, 1
        %s171 = scalar_select %p170, %s18, 1
        %s172 = smul.addr %s171, 8
        %s173 = scalar_lea.vmem %s0, %s172
        %p174 = pneg %p39
        %p175 = pneg %p36
        %p176 = pneg %p60
        %p177 = pneg %p57
        %p178 = pneg %p81
        %p179 = pneg %p78
        %p180 = pneg %p102
        %p181 = pneg %p99
        %p182 = pneg %p128
        %p183 = pneg %p125
        %s184 = sand.u32 %s115, 1
        %s185 = scalar_lea.sflag [#allocation3], %s184
        %s186 = sand.u32 %s115, 1
        %s187 = smul.addr %s186, 8
        %s188 = scalar_lea.vmem [#allocation2], %s187
        %p189 = scmp.lt.s32.totalorder %s18, 1
        %s190 = scalar_select %p189, %s18, 1
        %s191 = smul.addr %s190, 8
        %s192 = scalar_lea.vmem %s0, %s191
        %v193 = vld [vmem:[%s192] sm:$0xff]
        %v194 = vld [vmem:[%s1] sm:$0xff]
        %v195 = vld [vmem:[%s1 + $0x8] sm:$0xff]
        %v196 = vld [vmem:[%s1 + $0x10] sm:$0xff]
        %v197 = vld [vmem:[%s1 + $0x18] sm:$0xff]
        %v198 = vld [vmem:[%s1 + $0x20] sm:$0xff]
        %v199 = vld [vmem:[%s1 + $0x28] sm:$0xff]
        %v200 = vld [vmem:[%s1 + $0x30] sm:$0xff]
        %v201 = vld [vmem:[%s1 + $0x38] sm:$0xff]
        %v202 = vmul.f32 %v194, 0.17677669
        %v203 = vmul.f32 %v195, 0.17677669
        %v204 = vmul.f32 %v196, 0.17677669
        %v205 = vmul.f32 %v197, 0.17677669
        %v206 = vmul.f32 %v198, 0.17677669
        %v207 = vmul.f32 %v199, 0.17677669
        %v208 = vmul.f32 %v200, 0.17677669
        %v209 = vmul.f32 %v201, 0.17677669
        %v210 = vld [vmem:[%s2] sm:$0xff]
        %v211 = vld [vmem:[%s2 + $0x8] sm:$0xff]
        %v212 = vld [vmem:[%s2 + $0x10] sm:$0xff]
        %v213 = vld [vmem:[%s2 + $0x18] sm:$0xff]
        %v214 = vld [vmem:[%s2 + $0x20] sm:$0xff]
        %v215 = vld [vmem:[%s2 + $0x28] sm:$0xff]
        %v216 = vld [vmem:[%s2 + $0x30] sm:$0xff]
        %v217 = vld [vmem:[%s2 + $0x38] sm:$0xff]
        %v218 = vmul.f32 %v210, 0.17677669
        %v219 = vmul.f32 %v211, 0.17677669
        %v220 = vmul.f32 %v212, 0.17677669
        %v221 = vmul.f32 %v213, 0.17677669
        %v222 = vmul.f32 %v214, 0.17677669
        %v223 = vmul.f32 %v215, 0.17677669
        %v224 = vmul.f32 %v216, 0.17677669
        %v225 = vmul.f32 %v217, 0.17677669
        %v226 = vld [vmem:[%s3] sm:$0xff]
        %v227 = vld [vmem:[%s3 + $0x8] sm:$0xff]
        %v228 = vld [vmem:[%s3 + $0x10] sm:$0xff]
        %v229 = vld [vmem:[%s3 + $0x18] sm:$0xff]
        %v230 = vmul.f32 %v226, 0.125
        %v231 = vmul.f32 %v227, 0.125
        %v232 = vmul.f32 %v228, 0.125
        %v233 = vmul.f32 %v229, 0.125
        %vm234 = vcmask 261120
        %v236 = vsel %vm234, %v193, 0
        %v239 = vsel %vm234, %v202, 0
        %v242 = vsel %vm234, %v203, 0
        %v245 = vsel %vm234, %v204, 0
        %v248 = vsel %vm234, %v205, 0
        %v251 = vsel %vm234, %v206, 0
        %v254 = vsel %vm234, %v207, 0
        %v257 = vsel %vm234, %v208, 0
        %v260 = vsel %vm234, %v209, 0
        %262 = vmatpush.xpose.msra.mxu0 0.0
        %263 = vmatpush.xpose.msra.mxu0 0.0
        %264 = vmatpush.xpose.msra.mxu0 0.0
        %265 = vmatpush.xpose.msra.mxu0 0.0
        %266 = vmatpush.xpose.msra.mxu0 0.0
        %267 = vmatpush.xpose.msra.mxu0 0.0
        %268 = vmatpush.xpose.msra.mxu0 0.0
        %269 = vmatpush.xpose.msra.mxu0 0.0
        %270 = vmatpush.xpose.msra.mxu0 %v260
        %271 = vmatpush.xpose.msra.mxu0 %v257
        %272 = vmatpush.xpose.msra.mxu0 %v254
        %273 = vmatpush.xpose.msra.mxu0 %v251
        %274 = vmatpush.xpose.msra.mxu0 %v248
        %275 = vmatpush.xpose.msra.mxu0 %v245
        %276 = vmatpush.xpose.msra.mxu0 %v242
        %277 = vmatpush.xpose.msra.mxu0 %v239
        %278 = vmatmul.f32.gmra.mxu0 %v236
        %v279 = vpop.f32.mrf.mxu0
        %v280 = vadd.f32 0.0, %v279
        %281 = vdwg.mxu0
        %v282 = vmul.f32 %v280, %v280
        %vm283 = vcmask 523264
        %v284 = vsel %vm283, %v282, 0.0
        %285 = vadd.xlane.f32.xlu0 %v284
        %v286 = vpop.xlane.xlu0 %285
        %v287 = vrot.slane %v286, 4
        %v288 = vadd.f32 %v286, %v287
        %v289 = vrot.slane %v288, 2
        %v290 = vadd.f32 %v288, %v289
        %v291 = vrot.slane %v290, 1
        %v292 = vadd.f32 %v290, %v291
        %v293 = vrsqrt.pop %v292
        %v294 = vmul.f32 %v293, %v292
        %v295 = vmul.f32 %v294, %v293
        %v296 = vmul.f32 0.5, %v295
        %v297 = vsub.f32 1.5, %v296
        %v298 = vmul.f32 %v293, %v297
        %v299 = vmul.f32 %v292, %v298
        %vm300 = vcmp.eq.f32.partialorder %v292, inf
        %v301 = vsel %vm300, %v292, %v299
        %vm302 = vcmp.eq.f32.partialorder %v292, 0.0
        %v303 = vand.u32 %v292, 2147483648
        %v304 = vsel %vm302, %v303, %v301
        %v305 = vmul.f32 %v304, 0.044194173
        %v306 = vadd.f32 %v305, 0.0001
        %v307 = vrcp.pop %v306
        %v308 = vmul.f32 %v306, %v307
        %v309 = vsub.f32 1.0, %v308
        %v310 = vmul.f32 %v307, %v309
        %v311 = vadd.f32 %v307, %v310
        %vm312 = vweird.f32 %v306
        %vm313 = vweird.f32 %v307
        %vm314 = vmor %vm312, %vm313
        %v315 = vsel %vm314, %v307, %v311
        %v316 = vand.u32 2147483647, %v306
        %vm317 = vcmp.eq.f32.partialorder %v316, 8.507059e+37
        %v318 = vand.u32 %v306, 2147483648
        %v319 = vor.u32 1.1754944e-38, %v318
        %v320 = vsel %vm317, %v319, %v315
        %v321 = vmul.f32 %v280, %v320
        %v323 = vsel %vm283, %v321, 0
        %325 = vmatpush.xpose.msra.mxu0 0.0
        %326 = vmatpush.xpose.msra.mxu0 0.0
        %327 = vmatpush.xpose.msra.mxu0 0.0
        %328 = vmatpush.xpose.msra.mxu0 0.0
        %329 = vmatpush.xpose.msra.mxu0 0.0
        %330 = vmatpush.xpose.msra.mxu0 0.0
        %331 = vmatpush.xpose.msra.mxu0 0.0
        %332 = vmatpush.xpose.msra.mxu0 0.0
        %333 = vmatpush.xpose.msra.mxu0 0.0
        %334 = vmatpush.xpose.msra.mxu0 0.0
        %335 = vmatpush.xpose.msra.mxu0 0.0
        %336 = vmatpush.xpose.msra.mxu0 0.0
        %337 = vmatpush.xpose.msra.mxu0 0.0
        %338 = vmatpush.xpose.msra.mxu0 0.0
        %339 = vmatpush.xpose.msra.mxu0 0.0
        %340 = vmatpush.xpose.msra.mxu0 %v323
        %341 = vmatmul.f32.gmra.mxu0 %v323
        %v342 = vpop.f32.mrf.mxu0
        %v343 = vadd.f32 0.0, %v342
        %344 = vdwg.mxu0
        %v345 = vmul.f32 %v343, 0.125
        %vm346 = vcmask 64512
        %v347 = vsel %vm346, %v345, -inf
        %348 = vmax.xlane.f32.xlu0 %v347
        %v349 = vpop.xlane.xlu0 %348
        %v350 = vsub.f32 %v345, %v349
        %v351 = vmul.f32 %v350, 1.442695
        %v352 = vpow.pop %v351
        %v353 = vsel %vm346, %v352, 0.0
        %354 = vadd.xlane.f32.xlu0 %v353
        %v355 = vpop.xlane.xlu0 %354
        %v356 = vrcp.pop %v355
        %v357 = vmul.f32 %v355, %v356
        %v358 = vsub.f32 1.0, %v357
        %v359 = vmul.f32 %v356, %v358
        %v360 = vadd.f32 %v356, %v359
        %vm361 = vweird.f32 %v355
        %vm362 = vweird.f32 %v356
        %vm363 = vmor %vm361, %vm362
        %v364 = vsel %vm363, %v356, %v360
        %v365 = vand.u32 2147483647, %v355
        %vm366 = vcmp.eq.f32.partialorder %v365, 8.507059e+37
        %v367 = vand.u32 %v355, 2147483648
        %v368 = vor.u32 1.1754944e-38, %v367
        %v369 = vsel %vm366, %v368, %v364
        %v370 = vmul.f32 %v352, %v369
        %v372 = vsel %vm234, %v218, 0
        %v375 = vsel %vm234, %v219, 0
        %v378 = vsel %vm234, %v220, 0
        %v381 = vsel %vm234, %v221, 0
        %v384 = vsel %vm234, %v222, 0
        %v387 = vsel %vm234, %v223, 0
        %v390 = vsel %vm234, %v224, 0
        %v393 = vsel %vm234, %v225, 0
        %395 = vmatpush.xpose.msra.mxu0 0.0
        %396 = vmatpush.xpose.msra.mxu0 0.0
        %397 = vmatpush.xpose.msra.mxu0 0.0
        %398 = vmatpush.xpose.msra.mxu0 0.0
        %399 = vmatpush.xpose.msra.mxu0 0.0
        %400 = vmatpush.xpose.msra.mxu0 0.0
        %401 = vmatpush.xpose.msra.mxu0 0.0
        %402 = vmatpush.xpose.msra.mxu0 0.0
        %403 = vmatpush.xpose.msra.mxu0 %v393
        %404 = vmatpush.xpose.msra.mxu0 %v390
        %405 = vmatpush.xpose.msra.mxu0 %v387
        %406 = vmatpush.xpose.msra.mxu0 %v384
        %407 = vmatpush.xpose.msra.mxu0 %v381
        %408 = vmatpush.xpose.msra.mxu0 %v378
        %409 = vmatpush.xpose.msra.mxu0 %v375
        %410 = vmatpush.xpose.msra.mxu0 %v372
        %411 = vmatmul.f32.gmra.mxu0 %v236
        %v412 = vpop.f32.mrf.mxu0
        %v413 = vadd.f32 0.0, %v412
        %414 = vdwg.mxu0
        %v416 = vsel %vm346, %v370, 0
        %418 = vmatpush.msra.mxu0 0.0
        %419 = vmatpush.msra.mxu0 0.0
        %420 = vmatpush.msra.mxu0 0.0
        %421 = vmatpush.msra.mxu0 0.0
        %422 = vmatpush.msra.mxu0 0.0
        %423 = vmatpush.msra.mxu0 0.0
        %424 = vmatpush.msra.mxu0 0.0
        %425 = vmatpush.msra.mxu0 0.0
        %426 = vmatpush.msra.mxu0 0.0
        %427 = vmatpush.msra.mxu0 0.0
        %428 = vmatpush.msra.mxu0 0.0
        %429 = vmatpush.msra.mxu0 0.0
        %430 = vmatpush.msra.mxu0 0.0
        %431 = vmatpush.msra.mxu0 0.0
        %432 = vmatpush.msra.mxu0 0.0
        %433 = vmatpush.msra.mxu0 %v413
        %434 = vmatmul.f32.gmra.mxu0 %v416
        %v435 = vpop.f32.mrf.mxu0
        %v436 = vadd.f32 0.0, %v435
        %437 = vdwg.mxu0
        %v439 = vsel %vm283, %v436, 0
        %v442 = vsel %vm283, %v230, 0
        %v445 = vsel %vm283, %v231, 0
        %v448 = vsel %vm283, %v232, 0
        %v451 = vsel %vm283, %v233, 0
        %453 = vmatpush.xpose.msra.mxu0 0.0
        %454 = vmatpush.xpose.msra.mxu0 0.0
        %455 = vmatpush.xpose.msra.mxu0 0.0
        %456 = vmatpush.xpose.msra.mxu0 0.0
        %457 = vmatpush.xpose.msra.mxu0 0.0
        %458 = vmatpush.xpose.msra.mxu0 0.0
        %459 = vmatpush.xpose.msra.mxu0 0.0
        %460 = vmatpush.xpose.msra.mxu0 0.0
        %461 = vmatpush.xpose.msra.mxu0 0.0
        %462 = vmatpush.xpose.msra.mxu0 0.0
        %463 = vmatpush.xpose.msra.mxu0 0.0
        %464 = vmatpush.xpose.msra.mxu0 0.0
        %465 = vmatpush.xpose.msra.mxu0 %v451
        %466 = vmatpush.xpose.msra.mxu0 %v448
        %467 = vmatpush.xpose.msra.mxu0 %v445
        %468 = vmatpush.xpose.msra.mxu0 %v442
        %469 = vmatmul.f32.gmra.mxu0 %v439
        %v470 = vpop.f32.mrf.mxu0
        %v471 = vadd.f32 0.0, %v470
        %472 = vdwg.mxu0
        %473 = vst.msk [vmem:[%s188] sm:$0xff] %vm234, %v471
        %s474 = sand.u32 %s115, 1
        %s475 = scalar_lea.sflag [#allocation3], %s474
        %s476 = sand.u32 %s115, 1
        %s477 = smul.addr %s476, 8
        %s478 = scalar_lea.vmem [#allocation2], %s477
        // Predicated region
        $region37: #{tpu_custom_call.1} parent=35 // pred_check
          %p479 = pneg %p125
        $region38: #{tpu_custom_call.1} parent=35 // pred_check_branch
          %481 = sbr.rel (%p479) target = $region40
        $region39: #{tpu_custom_call.1} parent=35 // pred_region
          %483 = vsyncadd %s475, 0
          %s484 = smul.addr %s18, 8
          %s485 = scalar_lea.hbm %s4, %s484
          %s487 = sshll.u32 %s478, 4
          %s488 = int_to_ptr.vmem [resolvable:$true] %s487
          %s489 = sshll.u32 %s485, 4
          %s490 = int_to_ptr.hbm [resolvable:$true] %s489
          %492 = dma.vmem_to_hbm [thread:$0]  %s488, 128, %s490, %s475
        $region40: #{tpu_custom_call.1} parent=35 // pred_fallthru
          _
      $region36: #{tpu_custom_call.1} parent=5 // pred_fallthru
        _
      %p493 = scmp.le.s32.totalorder 2, %s13
      // Predicated region
      $region41: #{tpu_custom_call.1} parent=5 // pred_check
        %p494 = pneg %p493
      $region42: #{tpu_custom_call.1} parent=5 // pred_check_branch
        %496 = sbr.rel (%p494) target = $region44
      $region43: #{tpu_custom_call.1} parent=5 // pred_region
        %s497 = ssub.s32 %s13, 2
        // Predicated region
        $region45: #{tpu_custom_call.1} parent=43 // pred_check
          %p498 = pneg %p131
        $region46: #{tpu_custom_call.1} parent=43 // pred_check_branch
          %500 = sbr.rel (%p498) target = $region48
        $region47: #{tpu_custom_call.1} parent=43 // pred_region
          %s501 = sand.u32 %s116, 1
          %s502 = scalar_lea.sflag [#allocation3], %s501
          %s503 = sand.u32 %s116, 1
          %s504 = smul.addr %s503, 8
          %s505 = scalar_lea.vmem [#allocation2], %s504
          %507 = dma.done %s502, 128
        $region48: #{tpu_custom_call.1} parent=43 // pred_fallthru
          _
      $region44: #{tpu_custom_call.1} parent=5 // pred_fallthru
        _
    $region6: #{tpu_custom_call.1} parent=1 // loop_footer
      %s17 = sadd.s32 1, %s13
    $region7: #{tpu_custom_call.1} parent=1 // loop_footer_branch
      %12 = sbr.rel target = $region3
    $region8: #{tpu_custom_call.1} parent=1 // loop_exit
      _
    %508 = vsyncpa [#allocation3], 1
    %s509 = scalar_lea.sflag [#allocation3], 1
    %510 = vsyncpa %s509, 1

</llo_original>
